<compile_context>
chip_gen: v6e
topology: v6e:2x2x1
jax: 0.10.0
libtpu: 0.0.40
codegen_flags: <defaults>
</compile_context>

<pallas_src>
import jax
import jax.numpy as jnp
from jax import lax
from jax.experimental import pallas as pl
from jax.experimental.pallas import tpu as pltpu


def _vq_kernel(z_ref, et_ref, esq_ref, idx_ref):
    """score = ||e||^2 - 2 z.E^T, first-index argmin over codebook -> idx."""
    # Fold the -2 into the small (TB, D) operand instead of the (TB, Np) result.
    z_m2 = z_ref[...] * jnp.float32(-2.0)          # (TB, D)  f32, streamed per tile
    e_t = et_ref[...]                              # (D, Np)  f32, resident (constant index_map)
    e_sq = esq_ref[...]                            # (1, Np)  f32, resident (pad rows = 1e30)

    # Cross term on the MXU with a native (M,K)x(K,N) layout, Np lane-dense.
    cross = jnp.dot(z_m2, e_t, preferred_element_type=jnp.float32)   # (TB, Np)

    # ||z||^2 dropped: constant per row, cannot change the argmin.
    score = cross + e_sq                                              # (TB, Np)

    # argmin along axis=1 with first-index tie-breaking: min + compare + min-of-idx.
    # col is (1, Np) and broadcasts -- no (TB, Np) iota materialized.
    n = score.shape[1]
    col = lax.broadcasted_iota(jnp.int32, (1, n), 1)                  # (1, Np)
    min_s = jnp.min(score, axis=1, keepdims=True)                     # (TB, 1)
    idx = jnp.min(jnp.where(score <= min_s, col, n),
                  axis=1, keepdims=True)                              # (TB, 1) int32
    idx_ref[...] = idx

    # TODO(synk): for codebooks too large for one resident VMEM tile, add a
    # trailing "arbitrary" grid axis over Np-tiles with a running
    # (min_score, argmin) carried in VMEM scratch (init/finalize via pl.when).


def _ceil_to(x, m):
    return ((x + m - 1) // m) * m


def _vmem_capacity_bytes():
    """Per-TensorCore VMEM capacity; conservative v7x fallback (64 MiB)."""
    try:
        info = pltpu.get_tpu_info()
        cap = getattr(info, "vmem_capacity_bytes", None)
        if cap:
            return int(cap)
    except Exception:
        pass
    return 64 * 1024 * 1024


def _derive_batch_tile(batch, n_pad, z_dim, vmem_budget_bytes, max_block_batch):
    """Largest multiple-of-8 batch tile whose working set fits the VMEM budget,
    capped so the parallel batch axis still has multiple grid steps (megacore)."""
    itemsize = 4
    # Resident operands (constant index_map; budget 2x for pipeline buffers).
    resident = 2 * (n_pad * z_dim + n_pad) * itemsize
    # Per-batch-row cost: double-buffered z tile + idx tile, plus ~4 live
    # (TB, Np) f32 intermediates (cross / score / where / compare).
    per_row = 2 * z_dim * itemsize + 2 * itemsize + 4 * n_pad * itemsize
    avail = max(vmem_budget_bytes - resident, 8 * per_row)
    tb = max(8, (avail // per_row) // 8 * 8)
    tb = min(tb, max_block_batch)

    # Megacore (v7x: 2 TCs): make sure the "parallel" grid axis has work to shard.
    if batch >= 32:
        target_steps = 4
    elif batch >= 16:
        target_steps = 2
    else:
        target_steps = 1
    tb = min(tb, _ceil_to(max(1, -(-batch // target_steps)), 8))
    tb = min(tb, _ceil_to(max(batch, 8), 8))
    return max(8, tb)


def vq_sampler_forward(z, embeddings, *, max_block_batch=1024):
    """z: (batch, z_dim) f32 standard-normal samples; embeddings: (num_embeddings, z_dim)."""
    batch, z_dim = z.shape
    n_emb, e_dim = embeddings.shape
    assert e_dim == z_dim

    lane = 128
    n_pad = _ceil_to(n_emb, lane)

    # One-time layout plumbing in the wrapper (reused across forward calls):
    #   e_t:  (z_dim, n_pad) transposed codebook, padded cols = 0
    #   e_sq: (1, n_pad)     ||e||^2 with 1e30 sentinel on padded cols
    e_f32 = embeddings.astype(jnp.float32)
    e_t = jnp.zeros((z_dim, n_pad), jnp.float32).at[:, :n_emb].set(e_f32.T)
    e_sq = jnp.sum(e_t * e_t, axis=0)
    e_sq = jnp.where(jnp.arange(n_pad) < n_emb, e_sq,
                     jnp.float32(1e30)).reshape(1, n_pad)

    # Generation-aware VMEM budget (v7x 64 MiB vs v5e/v6e 128 MiB per core).
    vmem_cap = _vmem_capacity_bytes()
    vmem_limit = min((vmem_cap * 3) // 4, 96 * 1024 * 1024)
    tb = _derive_batch_tile(batch, n_pad, z_dim,
                            vmem_limit - 4 * 1024 * 1024, max_block_batch)

    padded_batch = _ceil_to(batch, tb)
    z_p = z.astype(jnp.float32)
    if padded_batch != batch:
        z_p = jnp.pad(z_p, ((0, padded_batch - batch), (0, 0)))

    grid = (padded_batch // tb,)

    idx_out = pl.pallas_call(
        _vq_kernel,
        out_shape=jax.ShapeDtypeStruct((padded_batch, 1), jnp.int32),
        grid_spec=pltpu.PrefetchScalarGridSpec(
            num_scalar_prefetch=0,
            grid=grid,
            in_specs=[
                pl.BlockSpec((tb, z_dim), lambda i: (i, 0)),      # z: streamed per tile
                pl.BlockSpec((z_dim, n_pad), lambda i: (0, 0)),   # codebook^T: resident
                pl.BlockSpec((1, n_pad), lambda i: (0, 0)),       # ||e||^2: resident
            ],
            out_specs=pl.BlockSpec((tb, 1), lambda i: (i, 0)),    # argmin indices
        ),
        compiler_params=pltpu.CompilerParams(
            dimension_semantics=("parallel",),
            vmem_limit_bytes=int(vmem_limit),
        ),
    )(z_p, e_t, e_sq)

    # Gather E[idx] in XLA on the original codebook: bit-exact, no second matmul.
    idx = idx_out[:batch, 0]
    return jnp.take(embeddings, idx, axis=0), idx


if __name__ == "__main__":
    # Module config (small, consistent with the PyTorch __init__):
    z_dim = 32
    num_embeddings = 16
    batch_size = 8

    key = jax.random.PRNGKey(0)
    k_emb, k_z = jax.random.split(key)

    # Deterministic parameter init: embeddings ~ N(0, 1), shape (num_embeddings, z_dim).
    embeddings = jax.random.normal(k_emb, (num_embeddings, z_dim), dtype=jnp.float32)

    # forward(batch_size): z ~ N(0, 1), shape (batch_size, z_dim).
    # TODO(synk): RNG stays in plain JAX (torch.randn has no bit-exact Pallas
    # equivalent; in-kernel pltpu.stateful_normal would change the sampled bits).
    z = jax.random.normal(k_z, (batch_size, z_dim), dtype=jnp.float32)

    z_embs, idx = vq_sampler_forward(z, embeddings)
    jax.block_until_ready(z_embs)

    # Reference check in plain JAX (same semantics as the PyTorch forward).
    dist_ref = jnp.sum((z[:, None, :] - embeddings[None, :, :]) ** 2, axis=2)
    idx_ref = jnp.argmin(dist_ref, axis=1)
    ref = embeddings[idx_ref]
    assert z_embs.shape == (batch_size, z_dim)
    assert jnp.array_equal(idx, idx_ref), "index mismatch vs reference"
    assert jnp.allclose(z_embs, ref, atol=1e-5), "mismatch vs reference"

    print("KERNEL_OK")
</pallas_src>

<mosaic_0001>
module attributes {stable_mosaic.version = 11 : i64} {
  func.func @_vq_kernel(%arg0: i32, %arg1: memref<8x32xf32, #tpu.memory_space<vmem>>, %arg2: memref<32x128xf32, #tpu.memory_space<vmem>>, %arg3: memref<1x128xf32, #tpu.memory_space<vmem>>, %arg4: memref<8x1xi32, #tpu.memory_space<vmem>>) attributes {dimension_semantics = [#tpu.dimension_semantics<parallel>], iteration_bounds = array<i64: 1>, scalar_prefetch = 0 : i64, scratch_operands = 0 : i64, tpu.core_type = #tpu.core_type<tc>, window_params = [{transform_indices = @transform_0, window_bounds = array<i64: 8, 32>}, {pipeline_mode = #tpu.pipeline_mode<synchronous>, transform_indices = @transform_1, window_bounds = array<i64: 32, 128>}, {pipeline_mode = #tpu.pipeline_mode<synchronous>, transform_indices = @transform_2, window_bounds = array<i64: 1, 128>}, {transform_indices = @transform_3, window_bounds = array<i64: 8, 1>}]} {
    %c0 = arith.constant 0 : index
    %c0_0 = arith.constant 0 : index
    %0 = vector.load %arg1[%c0, %c0_0] : memref<8x32xf32, #tpu.memory_space<vmem>>, vector<8x32xf32>
    %cst = arith.constant -2.000000e+00 : f32
    %1 = vector.broadcast %cst : f32 to vector<8x32xf32>
    %2 = arith.mulf %0, %1 : vector<8x32xf32>
    %c0_1 = arith.constant 0 : index
    %c0_2 = arith.constant 0 : index
    %3 = vector.load %arg2[%c0_1, %c0_2] : memref<32x128xf32, #tpu.memory_space<vmem>>, vector<32x128xf32>
    %c0_3 = arith.constant 0 : index
    %c0_4 = arith.constant 0 : index
    %4 = vector.load %arg3[%c0_3, %c0_4] : memref<1x128xf32, #tpu.memory_space<vmem>>, vector<1x128xf32>
    %cst_5 = arith.constant dense<0.000000e+00> : vector<8x128xf32>
    %5 = tpu.matmul %2, %3, %cst_5 {dimension_numbers = #tpu.dot_dimension_numbers<[1], [0], [0], [1], [0, 0, 1, 1], [], []>} : vector<8x32xf32>, vector<32x128xf32>, vector<8x128xf32> -> vector<8x128xf32>
    %6 = vector.broadcast %4 : vector<1x128xf32> to vector<8x128xf32>
    %7 = arith.addf %5, %6 : vector<8x128xf32>
    %8 = tpu.iota {dimensions = array<i32: 1>} : vector<1x128xi32>
    %cst_6 = arith.constant dense<0x7F800000> : vector<8xf32>
    %9 = vector.multi_reduction <minimumf>, %7, %cst_6 [1] : vector<8x128xf32> to vector<8xf32>
    %10 = vector.shape_cast %9 : vector<8xf32> to vector<8x1xf32>
    %11 = vector.broadcast %10 : vector<8x1xf32> to vector<8x128xf32>
    %12 = arith.cmpf ole, %7, %11 : vector<8x128xf32>
    %c128_i32 = arith.constant 128 : i32
    %13 = vector.shape_cast %8 : vector<1x128xi32> to vector<1x128xi32>
    %14 = vector.broadcast %13 : vector<1x128xi32> to vector<8x128xi32>
    %15 = vector.broadcast %c128_i32 : i32 to vector<8x128xi32>
    %16 = arith.select %12, %14, %15 : vector<8x128xi1>, vector<8x128xi32>
    %cst_7 = arith.constant dense<2147483647> : vector<8xi32>
    %17 = vector.multi_reduction <minsi>, %16, %cst_7 [1] : vector<8x128xi32> to vector<8xi32>
    %18 = vector.shape_cast %17 : vector<8xi32> to vector<8x1xi32>
    %c0_8 = arith.constant 0 : index
    %c0_9 = arith.constant 0 : index
    %19 = vector.load %arg4[%c0_8, %c0_9] : memref<8x1xi32, #tpu.memory_space<vmem>>, vector<8x1xi32>
    tpu.vector_store %arg4[%c0_8, %c0_9], %18 {strides = array<i32>} : memref<8x1xi32, #tpu.memory_space<vmem>>, vector<8x1xi32>,
    return
  }
  func.func @transform_0(%arg0: i32) -> (i32, i32) {
    %c0_i32 = arith.constant 0 : i32
    %c0_i32_0 = arith.constant 0 : i32
    return %arg0, %c0_i32 : i32, i32
  }
  func.func @transform_1(%arg0: i32) -> (i32, i32) {
    %c0_i32 = arith.constant 0 : i32
    %c0_i32_0 = arith.constant 0 : i32
    %c0_i32_1 = arith.constant 0 : i32
    return %c0_i32, %c0_i32_0 : i32, i32
  }
  func.func @transform_2(%arg0: i32) -> (i32, i32) {
    %c0_i32 = arith.constant 0 : i32
    %c0_i32_0 = arith.constant 0 : i32
    %c0_i32_1 = arith.constant 0 : i32
    return %c0_i32, %c0_i32_0 : i32, i32
  }
  func.func @transform_3(%arg0: i32) -> (i32, i32) {
    %c0_i32 = arith.constant 0 : i32
    %c0_i32_0 = arith.constant 0 : i32
    return %arg0, %c0_i32 : i32, i32
  }
}

</mosaic_0001>

<llo_original>
// kernel: tpu_custom_call.1
$region0: #{tpu_custom_call.1}
  #allocation0 [shape = 'u32[]', space=smem, size = 0x4, offset = 0x4, fixed_abs, tag = 'smem constant byte address 0x4 - core index']
  #allocation1 [shape = 'u32[144,128]{1,0:T(1,128)}', space=vmem, size = 0x12000, scoped, tag = 'internal scratch']
  %s0 = inlined_call_operand.hbm [shape: f32[8,32], index: 0, kind: input, shape index: {}]
  %s1 = inlined_call_operand.hbm [shape: f32[32,128], index: 1, kind: input, shape index: {}]
  %s2 = inlined_call_operand.vmem [shape: f32[1,128], index: 2, kind: input, shape index: {}]
  %s3 = inlined_call_operand.vmem [shape: s32[8,1], index: 3, kind: output, shape index: {}]
  %s4 = sld [smem:[#allocation0]]
  $region30: #{tpu_custom_call.1} parent=0
    _
  %s6 = ssub.s32 1, %s4
  %s7 = scalar_select 0, %s6, %s4
  $region1: #{tpu_custom_call.1} parent=0
    #allocation2 [shape = 'u8[4096]{0}', space=vmem, size = 0x1000, scoped, tag = 'input window, operand 0, single buffered']
    #allocation3 [shape = 's32[1]{0}', space=sflag, size = 0x4, scoped, tag = 'scoped memory for tpu_custom_call.1']
    #allocation4 [shape = 'u8[16384]{0}', space=vmem, size = 0x4000, scoped, tag = 'input window, operand 1, single buffered']
    #allocation5 [shape = 's32[1]{0}', space=sflag, size = 0x4, scoped, tag = 'scoped memory for tpu_custom_call.1']
    %8 = vsyncpa [#allocation3], 0
    %9 = vsyncpa [#allocation5], 0
    // Predicated region
    $region2: #{tpu_custom_call.1} parent=1 // pred_check
      _
    $region3: #{tpu_custom_call.1} parent=1 // pred_check_branch
      %11 = sbr.rel (0) target = $region5
    $region4: #{tpu_custom_call.1} parent=1 // pred_region
      %s13 = ssub.s32 128, 128
      %14 = vsyncadd [#allocation3], %s13
      %s16 = sshll.u32 [#allocation2], 4
      %s17 = int_to_ptr.vmem [resolvable:$true] %s16
      %19 = dma.hbm_to_vmem [thread:$0]  %s0, 128, %s17, [#allocation3]
    $region5: #{tpu_custom_call.1} parent=1 // pred_fallthru
      _
    // Predicated region
    $region6: #{tpu_custom_call.1} parent=1 // pred_check
      _
    $region7: #{tpu_custom_call.1} parent=1 // pred_check_branch
      %21 = sbr.rel (0) target = $region9
    $region8: #{tpu_custom_call.1} parent=1 // pred_region
      %s23 = ssub.s32 512, 512
      %24 = vsyncadd [#allocation5], %s23
      %s25 = sshll.u32 [#allocation4], 4
      %s26 = int_to_ptr.vmem [resolvable:$true] %s25
      %31 = dma.hbm_to_vmem [thread:$0]  %s1, 512, %s26, [#allocation5], 128, 128, 8
    $region9: #{tpu_custom_call.1} parent=1 // pred_fallthru
      _
    // Predicated region
    $region10: #{tpu_custom_call.1} parent=1 // pred_check
      _
    $region11: #{tpu_custom_call.1} parent=1 // pred_check_branch
      %33 = sbr.rel (0) target = $region13
    $region12: #{tpu_custom_call.1} parent=1 // pred_region
      _
    $region13: #{tpu_custom_call.1} parent=1 // pred_fallthru
      _
    // Predicated region
    $region14: #{tpu_custom_call.1} parent=1 // pred_check
      _
    $region15: #{tpu_custom_call.1} parent=1 // pred_check_branch
      %35 = sbr.rel (0) target = $region17
    $region16: #{tpu_custom_call.1} parent=1 // pred_region
      %36 = dma.done [#allocation3], 128
    $region17: #{tpu_custom_call.1} parent=1 // pred_fallthru
      _
    // Predicated region
    $region18: #{tpu_custom_call.1} parent=1 // pred_check
      _
    $region19: #{tpu_custom_call.1} parent=1 // pred_check_branch
      %38 = sbr.rel (0) target = $region21
    $region20: #{tpu_custom_call.1} parent=1 // pred_region
      %39 = dma.done [#allocation5], 512
    $region21: #{tpu_custom_call.1} parent=1 // pred_fallthru
      _
    %v40 = vld [vmem:[#allocation2] sm:$0xff]
    %v41 = vmul.f32 %v40, -2.0
    %v42 = vld [vmem:[#allocation4] sm:$0xff]
    %v43 = vld [vmem:[#allocation4 + $0x8] sm:$0xff]
    %v44 = vld [vmem:[#allocation4 + $0x10] sm:$0xff]
    %v45 = vld [vmem:[#allocation4 + $0x18] sm:$0xff]
    %v46 = vld [vmem:[%s2] sm:$0x1]
    %v48 = vlaneseq
    %v49 = vshrl.u32 %v48, 7
    %v50 = vsub.s32 0, %v49
    %v51 = vrot.slane %v46, %v50
    %vm53 = vcmask 261120
    %v55 = vsel %vm53, %v41, 0
    %57 = vmatprep.subr.mxu0 0.0
    %58 = vmatpush1.msra.mxu0 0.0
    %59 = vmatprep.subr.mxu0 0.0
    %60 = vmatpush1.msra.mxu0 0.0
    %61 = vmatprep.subr.mxu0 0.0
    %62 = vmatpush1.msra.mxu0 0.0
    %63 = vmatprep.subr.mxu0 0.0
    %64 = vmatpush1.msra.mxu0 0.0
    %65 = vmatprep.subr.mxu0 0.0
    %66 = vmatpush1.msra.mxu0 0.0
    %67 = vmatprep.subr.mxu0 0.0
    %68 = vmatpush1.msra.mxu0 0.0
    %69 = vmatprep.subr.mxu0 0.0
    %70 = vmatpush1.msra.mxu0 0.0
    %71 = vmatprep.subr.mxu0 0.0
    %72 = vmatpush1.msra.mxu0 0.0
    %73 = vmatprep.subr.mxu0 0.0
    %74 = vmatpush1.msra.mxu0 0.0
    %75 = vmatprep.subr.mxu0 0.0
    %76 = vmatpush1.msra.mxu0 0.0
    %77 = vmatprep.subr.mxu0 0.0
    %78 = vmatpush1.msra.mxu0 0.0
    %79 = vmatprep.subr.mxu0 0.0
    %80 = vmatpush1.msra.mxu0 0.0
    %81 = vmatprep.subr.mxu0 0.0
    %82 = vmatpush1.msra.mxu0 %v45
    %83 = vmatprep.subr.mxu0 0.0
    %84 = vmatpush1.msra.mxu0 %v44
    %85 = vmatprep.subr.mxu0 0.0
    %86 = vmatpush1.msra.mxu0 %v43
    %87 = vmatprep.subr.mxu0 0.0
    %88 = vmatpush1.msra.mxu0 %v42
    %89 = vmatprep.subr.mxu0 0.0
    %90 = vmatpush2.msra.mxu0 0.0
    %91 = vmatprep.subr.mxu0 0.0
    %92 = vmatpush2.msra.mxu0 0.0
    %93 = vmatprep.subr.mxu0 0.0
    %94 = vmatpush2.msra.mxu0 0.0
    %95 = vmatprep.subr.mxu0 0.0
    %96 = vmatpush2.msra.mxu0 0.0
    %97 = vmatprep.subr.mxu0 0.0
    %98 = vmatpush2.msra.mxu0 0.0
    %99 = vmatprep.subr.mxu0 0.0
    %100 = vmatpush2.msra.mxu0 0.0
    %101 = vmatprep.subr.mxu0 0.0
    %102 = vmatpush2.msra.mxu0 0.0
    %103 = vmatprep.subr.mxu0 0.0
    %104 = vmatpush2.msra.mxu0 0.0
    %105 = vmatprep.subr.mxu0 0.0
    %106 = vmatpush2.msra.mxu0 0.0
    %107 = vmatprep.subr.mxu0 0.0
    %108 = vmatpush2.msra.mxu0 0.0
    %109 = vmatprep.subr.mxu0 0.0
    %110 = vmatpush2.msra.mxu0 0.0
    %111 = vmatprep.subr.mxu0 0.0
    %112 = vmatpush2.msra.mxu0 0.0
    %113 = vmatprep.subr.mxu0 0.0
    %114 = vmatpush2.msra.mxu0 0.0
    %115 = vmatprep.subr.mxu0 0.0
    %116 = vmatpush2.msra.mxu0 0.0
    %117 = vmatprep.subr.mxu0 0.0
    %118 = vmatpush2.msra.mxu0 0.0
    %119 = vmatprep.subr.mxu0 0.0
    %120 = vmatpush2.msra.mxu0 0.0
    %121 = vmatprep.mubr.f32.mxu0 0.0
    %122 = vmatmul.mubr.f32.gmra.mxu0 %v55
    %v123 = vpop.f32.mrf.mxu0
    %v124 = vadd.f32 %v51, %v123
    %v125 = vpop.f32.mrf.mxu0
    %126 = vdwg.mxu0
    %v127 = vlaneseq
    %v128 = vand.u32 %v127, 127
    %129 = vmin.xlane.f32.xlu0 %v124
    %v130 = vpop.xlane.xlu0 %129
    %vm131 = vcmp.le.f32.partialorder %v124, %v130
    %v132 = vsel %vm131, %v128, 128
    %v133 = vand.u32 %v132, 65535
    %v134 = vshra.s32 %v132, 16
    %v135 = vcvt.s32.f32 %v133
    %v136 = vcvt.s32.f32 %v134
    %137 = vmin.xlane.f32.xlu0 %v136
    %v138 = vpop.xlane.xlu0 %137
    %vm139 = vcmp.eq.f32.partialorder %v136, %v138
    %v140 = vsel %vm139, %v135, inf
    %141 = vmin.xlane.f32.xlu0 %v140
    %v142 = vpop.xlane.xlu0 %141
    %v143 = vcvt.f32.s32 %v142
    %v144 = vcvt.f32.s32 %v138
    %v145 = vshll.u32 %v144, 16
    %v146 = vadd.s32 %v145, %v143
    %vm147 = vcmask 7168
    %148 = vst.msk [vmem:[%s3] sm:$0xff] %vm147, %v146
    // Predicated region
    $region22: #{tpu_custom_call.1} parent=1 // pred_check
      _
    $region23: #{tpu_custom_call.1} parent=1 // pred_check_branch
      %150 = sbr.rel (0) target = $region25
    $region24: #{tpu_custom_call.1} parent=1 // pred_region
      _
    $region25: #{tpu_custom_call.1} parent=1 // pred_fallthru
      _
    // Predicated region
    $region26: #{tpu_custom_call.1} parent=1 // pred_check
      _
    $region27: #{tpu_custom_call.1} parent=1 // pred_check_branch
      %152 = sbr.rel (0) target = $region29
    $region28: #{tpu_custom_call.1} parent=1 // pred_region
      _
    $region29: #{tpu_custom_call.1} parent=1 // pred_fallthru
      _
    %153 = vsyncpa [#allocation3], 1
    %154 = vsyncpa [#allocation5], 1

</llo_original>
